<compile_context>
chip_gen: v7x
topology: tpu7x:2x2x1
jax: 0.10.0
libtpu: 0.0.40
codegen_flags: <defaults>
</compile_context>

<pallas_src>
import math

import jax
import jax.numpy as jnp
from jax import lax
from jax.experimental import pallas as pl
from jax.experimental.pallas import tpu as pltpu

ALPHA = 0.1  # module default

_TARGET_BLOCK_BYTES = 2 * 1024 * 1024    # VMEM footprint target per input block
_MAX_TILE_ROWS = 8192
_VMEM_LIMIT_FLOOR = 40 * 1024 * 1024     # > v5e's 16 MiB scoped default
_VMEM_LIMIT_CAP = 64 * 1024 * 1024       # v7x physical VMEM per TensorCore


def _cdiv(a, b):
    return -(-a // b)


def _round_up(x, m):
    return _cdiv(x, m) * m


def _sublane_granule(dtype):
    itemsize = jnp.dtype(dtype).itemsize
    return max(8, 32 // itemsize)        # f32 -> 8, bf16 -> 16, int8/fp8 -> 32


def _joints_2d_shape(shape):
    if len(shape) == 0:
        return 1, 1
    if len(shape) == 1:
        return 1, int(shape[0])
    return int(shape[0]), int(math.prod(shape[1:]))


def _pick_tile(rows, cols, dtype, max_rows):
    """Rows per block: ~_TARGET_BLOCK_BYTES of VMEM footprint, dtype-aligned."""
    granule = _sublane_granule(dtype)
    itemsize = jnp.dtype(dtype).itemsize
    row_foot = _round_up(max(cols, 1), 128) * itemsize      # VMEM bytes per row
    t = (_TARGET_BLOCK_BYTES // row_foot) // granule * granule
    t = max(granule, min(t, _MAX_TILE_ROWS))
    if max_rows is not None:
        t = min(t, _round_up(max(int(max_rows), 1), granule))
    t = min(t, _round_up(max(rows, 1), granule))
    return max(t, granule)


def _make_kernel(*, Rj, Cj, tile_j, Gj, T, F, tile_t, Gr, n_joint, n_diff, alpha):
    inv_nj = 1.0 / float(n_joint)
    # torch.mean of an empty tensor is NaN; mirror that for T == 1.
    inv_nd = (1.0 / float(n_diff)) if n_diff > 0 else float("nan")
    mask_j = (Rj % tile_j) != 0  # only the last joints block can be partial

    def kernel(pj_ref, tj_ref, pr_ref, out_ref, pos_acc, rot_acc, carry):
        i = pl.program_id(0)

        @pl.when(i == 0)
        def _init():
            pos_acc[...] = jnp.zeros_like(pos_acc)
            rot_acc[...] = jnp.zeros_like(rot_acc)
            carry[...] = jnp.zeros_like(carry)

        # ---- position loss partial: sum((pred - target)^2) over this tile ----
        @pl.when(i < Gj)
        def _pos():
            d = pj_ref[...].astype(jnp.float32) - tj_ref[...].astype(jnp.float32)
            sq = d * d
            if mask_j:
                gr = lax.broadcasted_iota(jnp.int32, (tile_j, Cj), 0) + i * tile_j
                sq = jnp.where(gr < Rj, sq, 0.0)
            pos_acc[...] += jnp.sum(sq, axis=0, keepdims=True)

        # ---- rotation smoothness partial: sum((r[t] - r[t-1])^2) ----
        @pl.when(i < Gr)
        def _rot():
            r = pr_ref[...].astype(jnp.float32)
            prev = pltpu.roll(r, shift=1, axis=0)            # prev[k] = r[k-1]
            row = lax.broadcasted_iota(jnp.int32, (tile_t, F), 0)
            # Row 0's predecessor is the last row of the previous tile (halo).
            prev = jnp.where(row == 0,
                             jnp.broadcast_to(carry[...], (tile_t, F)), prev)
            gt = row + i * tile_t                            # global time index
            diff = r - prev
            valid = (gt >= 1) & (gt <= T - 1)                # drop t=0 + padded rows
            rot_acc[...] += jnp.sum(jnp.where(valid, diff * diff, 0.0),
                                    axis=0, keepdims=True)
            # Carry this tile's last rotation row for the next tile's boundary.
            carry[...] = pr_ref[tile_t - 1:tile_t, :].astype(jnp.float32)

        # ---- finalize: single cross-lane reduce + scaling + combine ----
        @pl.when(i == pl.num_programs(0) - 1)
        def _fin():
            pos_sum = jnp.sum(pos_acc[...])
            rot_sum = jnp.sum(rot_acc[...])
            out_ref[0, 0] = pos_sum * inv_nj + alpha * (rot_sum * inv_nd)

    return kernel


def kinematic_loss(pred_joints, target_joints, pred_rotations, alpha=ALPHA,
                   max_rows_joints=None, max_rows_time=None):
    """Pallas TPU implementation of KinematicLoss.forward.

    Inputs may be f32 or bf16 (bf16 recommended on v5e/v6e: it halves HBM
    traffic; the f32 cast happens per-tile inside the kernel). Result is f32.
    `max_rows_*` only exist to force multi-block grids in tests.
    """
    assert pred_joints.shape == target_joints.shape
    assert pred_joints.dtype == target_joints.dtype

    nj = max(int(math.prod(pred_joints.shape)), 1)
    Rj, Cj = _joints_2d_shape(pred_joints.shape)

    T = int(pred_rotations.shape[0]) if pred_rotations.ndim >= 1 else 1
    F = int(math.prod(pred_rotations.shape[1:])) if pred_rotations.ndim > 1 else 1
    n_diff = (T - 1) * F

    # Trailing-dim merges only: layout-preserving, no HBM copy.
    pj2 = pred_joints.reshape(Rj, Cj)
    tj2 = target_joints.reshape(Rj, Cj)
    pr2 = pred_rotations.reshape(T, F)

    tile_j = _pick_tile(Rj, Cj, pj2.dtype, max_rows_joints)
    tile_t = _pick_tile(T, F, pr2.dtype, max_rows_time)

    Gj = _cdiv(Rj, tile_j)
    Gr = _cdiv(T, tile_t)
    G = max(Gj, Gr, 1)

    kernel = _make_kernel(Rj=Rj, Cj=Cj, tile_j=tile_j, Gj=Gj, T=T, F=F,
                          tile_t=tile_t, Gr=Gr, n_joint=nj, n_diff=n_diff,
                          alpha=float(alpha))

    itemsize_j = jnp.dtype(pj2.dtype).itemsize
    itemsize_r = jnp.dtype(pr2.dtype).itemsize
    cost = pl.CostEstimate(
        flops=3 * nj + 3 * max(n_diff, 0),
        transcendentals=0,
        bytes_accessed=2 * nj * itemsize_j + T * F * itemsize_r + 4,
    )

    # VMEM budget: 2 joint inputs x 2 bufs x block + rotation x 2 bufs + f32
    # temporaries; keep the requested limit under v7x's 64 MiB physical VMEM.
    foot_j = tile_j * _round_up(Cj, 128) * itemsize_j
    foot_r = tile_t * _round_up(F, 128) * itemsize_r
    vmem_limit = int(min(max(_VMEM_LIMIT_FLOOR, 6 * (2 * foot_j + foot_r)),
                         _VMEM_LIMIT_CAP))

    # Clamped index maps: the exhausted operand stops advancing (repeated block
    # index -> DMA elided); its accumulation is skipped via pl.when in-kernel.
    jmap = lambda i: (jnp.minimum(i, Gj - 1), 0)
    rmap = lambda i: (jnp.minimum(i, Gr - 1), 0)

    out = pl.pallas_call(
        kernel,
        out_shape=jax.ShapeDtypeStruct((1, 1), jnp.float32),
        grid_spec=pltpu.PrefetchScalarGridSpec(
            num_scalar_prefetch=0,
            grid=(G,),
            in_specs=[
                pl.BlockSpec((tile_j, Cj), jmap),
                pl.BlockSpec((tile_j, Cj), jmap),
                pl.BlockSpec((tile_t, F), rmap),
            ],
            out_specs=pl.BlockSpec(memory_space=pltpu.MemorySpace.SMEM),
            scratch_shapes=[
                pltpu.VMEM((1, Cj), jnp.float32),  # position partial sums
                pltpu.VMEM((1, F), jnp.float32),   # smoothness partial sums
                pltpu.VMEM((1, F), jnp.float32),   # halo: prev tile's last row
            ],
        ),
        compiler_params=pltpu.CompilerParams(
            dimension_semantics=("arbitrary",),
            vmem_limit_bytes=vmem_limit,
        ),
        cost_estimate=cost,
    )(pj2, tj2, pr2)
    # TODO(synk): v7x megacore - add a leading size-2 "parallel" axis with
    # per-core partial accumulators (handling the single time-boundary diff at
    # the split in the combine) to use both TensorCores; single-core here.
    return out[0, 0]


def kinematic_loss_ref(pred_joints, target_joints, pred_rotations, alpha=ALPHA):
    """Pure-JAX reference (mirrors the PyTorch forward)."""
    position_loss = jnp.mean((pred_joints - target_joints) ** 2)
    rotation_diff = pred_rotations[1:] - pred_rotations[:-1]
    smoothness_loss = jnp.mean(rotation_diff ** 2)
    return position_loss + alpha * smoothness_loss


if __name__ == "__main__":
    # Case 1: shapes implied by the module (T=8 frames, J=16 joints), f32.
    k1, k2, k3 = jax.random.split(jax.random.PRNGKey(0), 3)
    T, J = 8, 16
    pj = jax.random.normal(k1, (T, J, 3), dtype=jnp.float32)
    tj = jax.random.normal(k2, (T, J, 3), dtype=jnp.float32)
    pr = jax.random.normal(k3, (T, J, 4), dtype=jnp.float32)
    loss = jax.block_until_ready(kinematic_loss(pj, tj, pr))
    ref = kinematic_loss_ref(pj, tj, pr)
    assert jnp.allclose(loss, ref, rtol=1e-5, atol=1e-6), (loss, ref)

    # Case 2: ragged sizes + multi-block grid (partial-block masking and the
    # cross-tile smoothness halo carry).
    k4, k5, k6 = jax.random.split(jax.random.PRNGKey(1), 3)
    T2, J2 = 37, 5
    pj2 = jax.random.normal(k4, (T2, J2, 3), dtype=jnp.float32)
    tj2 = jax.random.normal(k5, (T2, J2, 3), dtype=jnp.float32)
    pr2 = jax.random.normal(k6, (T2, J2, 4), dtype=jnp.float32)
    loss2 = jax.block_until_ready(
        kinematic_loss(pj2, tj2, pr2, max_rows_joints=8, max_rows_time=8))
    ref2 = kinematic_loss_ref(pj2, tj2, pr2)
    assert jnp.allclose(loss2, ref2, rtol=1e-5, atol=1e-6), (loss2, ref2)

    # Case 3: bf16 inputs (16-row sublane granule) + skewed extents so the
    # rotation stream exhausts before the joints stream (clamped index_map).
    k7, k8, k9 = jax.random.split(jax.random.PRNGKey(2), 3)
    pj3 = jax.random.normal(k7, (40, 7, 3), dtype=jnp.bfloat16)
    tj3 = jax.random.normal(k8, (40, 7, 3), dtype=jnp.bfloat16)
    pr3 = jax.random.normal(k9, (21, 7, 4), dtype=jnp.bfloat16)
    loss3 = jax.block_until_ready(
        kinematic_loss(pj3, tj3, pr3, max_rows_joints=16, max_rows_time=16))
    ref3 = kinematic_loss_ref(pj3.astype(jnp.float32), tj3.astype(jnp.float32),
                              pr3.astype(jnp.float32))
    assert jnp.allclose(loss3, ref3, rtol=1e-5, atol=1e-6), (loss3, ref3)

    print("KERNEL_OK")
</pallas_src>

<mosaic_0001>
module attributes {stable_mosaic.version = 11 : i64} {
  func.func @kernel(%arg0: i32, %arg1: memref<8x48xf32, #tpu.memory_space<vmem>>, %arg2: memref<8x48xf32, #tpu.memory_space<vmem>>, %arg3: memref<8x64xf32, #tpu.memory_space<vmem>>, %arg4: memref<1x1xf32, #tpu.memory_space<smem>>, %arg5: memref<1x48xf32, #tpu.memory_space<vmem>>, %arg6: memref<1x64xf32, #tpu.memory_space<vmem>>, %arg7: memref<1x64xf32, #tpu.memory_space<vmem>>) attributes {dimension_semantics = [#tpu.dimension_semantics<arbitrary>], iteration_bounds = array<i64: 1>, scalar_prefetch = 0 : i64, scratch_operands = 3 : i64, tpu.core_type = #tpu.core_type<tc>, window_params = [{transform_indices = @transform_0, window_bounds = array<i64: 8, 48>}, {transform_indices = @transform_1, window_bounds = array<i64: 8, 48>}, {transform_indices = @transform_2, window_bounds = array<i64: 8, 64>}, {transform_indices = @transform_3, window_bounds = array<i64: 1, 1>}]} {
    %c0_i32 = arith.constant 0 : i32
    %0 = arith.cmpi eq, %arg0, %c0_i32 : i32
    %1 = arith.extui %0 : i1 to i32
    %c0_i32_0 = arith.constant 0 : i32
    %2 = arith.cmpi ne, %1, %c0_i32_0 : i32
    scf.if %2 {
      %cst = arith.constant 0.000000e+00 : f32
      %12 = vector.broadcast %cst : f32 to vector<1x48xf32>
      %c0 = arith.constant 0 : index
      %c0_6 = arith.constant 0 : index
      %13 = vector.load %arg5[%c0, %c0_6] : memref<1x48xf32, #tpu.memory_space<vmem>>, vector<1x48xf32>
      tpu.vector_store %arg5[%c0, %c0_6], %12 {strides = array<i32>} : memref<1x48xf32, #tpu.memory_space<vmem>>, vector<1x48xf32>,
      %cst_7 = arith.constant 0.000000e+00 : f32
      %14 = vector.broadcast %cst_7 : f32 to vector<1x64xf32>
      %c0_8 = arith.constant 0 : index
      %c0_9 = arith.constant 0 : index
      %15 = vector.load %arg6[%c0_8, %c0_9] : memref<1x64xf32, #tpu.memory_space<vmem>>, vector<1x64xf32>
      tpu.vector_store %arg6[%c0_8, %c0_9], %14 {strides = array<i32>} : memref<1x64xf32, #tpu.memory_space<vmem>>, vector<1x64xf32>,
      %cst_10 = arith.constant 0.000000e+00 : f32
      %16 = vector.broadcast %cst_10 : f32 to vector<1x64xf32>
      %c0_11 = arith.constant 0 : index
      %c0_12 = arith.constant 0 : index
      %17 = vector.load %arg7[%c0_11, %c0_12] : memref<1x64xf32, #tpu.memory_space<vmem>>, vector<1x64xf32>
      tpu.vector_store %arg7[%c0_11, %c0_12], %16 {strides = array<i32>} : memref<1x64xf32, #tpu.memory_space<vmem>>, vector<1x64xf32>,
    } else {
    }
    %c1_i32 = arith.constant 1 : i32
    %3 = arith.cmpi slt, %arg0, %c1_i32 : i32
    %4 = arith.extui %3 : i1 to i32
    %c0_i32_1 = arith.constant 0 : i32
    %5 = arith.cmpi ne, %4, %c0_i32_1 : i32
    scf.if %5 {
      %c0 = arith.constant 0 : index
      %c0_6 = arith.constant 0 : index
      %12 = vector.load %arg1[%c0, %c0_6] : memref<8x48xf32, #tpu.memory_space<vmem>>, vector<8x48xf32>
      %c0_7 = arith.constant 0 : index
      %c0_8 = arith.constant 0 : index
      %13 = vector.load %arg2[%c0_7, %c0_8] : memref<8x48xf32, #tpu.memory_space<vmem>>, vector<8x48xf32>
      %14 = arith.subf %12, %13 : vector<8x48xf32>
      %15 = arith.mulf %14, %14 : vector<8x48xf32>
      %c0_9 = arith.constant 0 : index
      %c0_10 = arith.constant 0 : index
      %16 = vector.load %arg5[%c0_9, %c0_10] : memref<1x48xf32, #tpu.memory_space<vmem>>, vector<1x48xf32>
      %cst = arith.constant dense<0.000000e+00> : vector<48xf32>
      %17 = vector.multi_reduction <add>, %15, %cst [0] : vector<8x48xf32> to vector<48xf32>
      %18 = vector.shape_cast %17 : vector<48xf32> to vector<1x48xf32>
      %19 = arith.addf %16, %18 : vector<1x48xf32>
      %c0_11 = arith.constant 0 : index
      %c0_12 = arith.constant 0 : index
      %20 = vector.load %arg5[%c0_11, %c0_12] : memref<1x48xf32, #tpu.memory_space<vmem>>, vector<1x48xf32>
      tpu.vector_store %arg5[%c0_11, %c0_12], %19 {strides = array<i32>} : memref<1x48xf32, #tpu.memory_space<vmem>>, vector<1x48xf32>,
    } else {
    }
    %c1_i32_2 = arith.constant 1 : i32
    %6 = arith.cmpi slt, %arg0, %c1_i32_2 : i32
    %7 = arith.extui %6 : i1 to i32
    %c0_i32_3 = arith.constant 0 : i32
    %8 = arith.cmpi ne, %7, %c0_i32_3 : i32
    scf.if %8 {
      %c0 = arith.constant 0 : index
      %c0_6 = arith.constant 0 : index
      %12 = vector.load %arg3[%c0, %c0_6] : memref<8x64xf32, #tpu.memory_space<vmem>>, vector<8x64xf32>
      %c1_i32_7 = arith.constant 1 : i32
      %13 = tpu.dynamic_rotate %12 by %c1_i32_7 dim 0 : vector<8x64xf32>, i32 -> vector<8x64xf32>
      %14 = tpu.iota {dimensions = array<i32: 0>} : vector<8x64xi32>
      %c0_i32_8 = arith.constant 0 : i32
      %15 = vector.broadcast %c0_i32_8 : i32 to vector<8x64xi32>
      %16 = arith.cmpi eq, %14, %15 : vector<8x64xi32>
      %c0_9 = arith.constant 0 : index
      %c0_10 = arith.constant 0 : index
      %17 = vector.load %arg7[%c0_9, %c0_10] : memref<1x64xf32, #tpu.memory_space<vmem>>, vector<1x64xf32>
      %18 = vector.shape_cast %17 : vector<1x64xf32> to vector<1x64xf32>
      %19 = vector.broadcast %18 : vector<1x64xf32> to vector<8x64xf32>
      %20 = arith.select %16, %19, %13 : vector<8x64xi1>, vector<8x64xf32>
      %c8_i32 = arith.constant 8 : i32
      %21 = arith.muli %arg0, %c8_i32 : i32
      %22 = vector.broadcast %21 : i32 to vector<8x64xi32>
      %23 = arith.addi %14, %22 : vector<8x64xi32>
      %24 = arith.subf %12, %20 : vector<8x64xf32>
      %c1_i32_11 = arith.constant 1 : i32
      %25 = vector.broadcast %c1_i32_11 : i32 to vector<8x64xi32>
      %26 = arith.cmpi sge, %23, %25 : vector<8x64xi32>
      %c7_i32 = arith.constant 7 : i32
      %27 = vector.broadcast %c7_i32 : i32 to vector<8x64xi32>
      %28 = arith.cmpi sle, %23, %27 : vector<8x64xi32>
      %29 = arith.andi %26, %28 : vector<8x64xi1>
      %c0_12 = arith.constant 0 : index
      %c0_13 = arith.constant 0 : index
      %30 = vector.load %arg6[%c0_12, %c0_13] : memref<1x64xf32, #tpu.memory_space<vmem>>, vector<1x64xf32>
      %31 = arith.mulf %24, %24 : vector<8x64xf32>
      %cst = arith.constant 0.000000e+00 : f32
      %32 = vector.broadcast %cst : f32 to vector<8x64xf32>
      %33 = arith.select %29, %31, %32 : vector<8x64xi1>, vector<8x64xf32>
      %cst_14 = arith.constant dense<0.000000e+00> : vector<64xf32>
      %34 = vector.multi_reduction <add>, %33, %cst_14 [0] : vector<8x64xf32> to vector<64xf32>
      %35 = vector.shape_cast %34 : vector<64xf32> to vector<1x64xf32>
      %36 = arith.addf %30, %35 : vector<1x64xf32>
      %c0_15 = arith.constant 0 : index
      %c0_16 = arith.constant 0 : index
      %37 = vector.load %arg6[%c0_15, %c0_16] : memref<1x64xf32, #tpu.memory_space<vmem>>, vector<1x64xf32>
      tpu.vector_store %arg6[%c0_15, %c0_16], %36 {strides = array<i32>} : memref<1x64xf32, #tpu.memory_space<vmem>>, vector<1x64xf32>,
      %c7 = arith.constant 7 : index
      %c0_17 = arith.constant 0 : index
      %38 = vector.load %arg3[%c7, %c0_17] : memref<8x64xf32, #tpu.memory_space<vmem>>, vector<1x64xf32>
      %c0_18 = arith.constant 0 : index
      %c0_19 = arith.constant 0 : index
      %39 = vector.load %arg7[%c0_18, %c0_19] : memref<1x64xf32, #tpu.memory_space<vmem>>, vector<1x64xf32>
      tpu.vector_store %arg7[%c0_18, %c0_19], %38 {strides = array<i32>} : memref<1x64xf32, #tpu.memory_space<vmem>>, vector<1x64xf32>,
    } else {
    }
    %c0_i32_4 = arith.constant 0 : i32
    %9 = arith.cmpi eq, %arg0, %c0_i32_4 : i32
    %10 = arith.extui %9 : i1 to i32
    %c0_i32_5 = arith.constant 0 : i32
    %11 = arith.cmpi ne, %10, %c0_i32_5 : i32
    scf.if %11 {
      %c0 = arith.constant 0 : index
      %c0_6 = arith.constant 0 : index
      %12 = vector.load %arg5[%c0, %c0_6] : memref<1x48xf32, #tpu.memory_space<vmem>>, vector<1x48xf32>
      %13 = vector.shape_cast %12 : vector<1x48xf32> to vector<1x1x48xf32>
      %cst = arith.constant dense<0.000000e+00> : vector<1xf32>
      %14 = vector.multi_reduction <add>, %13, %cst [1, 2] : vector<1x1x48xf32> to vector<1xf32>
      %15 = vector.shape_cast %14 : vector<1xf32> to vector<1x1x1xf32>
      %16 = vector.extract %15[0, 0, 0] : f32 from vector<1x1x1xf32>
      %c0_7 = arith.constant 0 : index
      %c0_8 = arith.constant 0 : index
      %17 = vector.load %arg6[%c0_7, %c0_8] : memref<1x64xf32, #tpu.memory_space<vmem>>, vector<1x64xf32>
      %18 = vector.shape_cast %17 : vector<1x64xf32> to vector<1x1x64xf32>
      %cst_9 = arith.constant dense<0.000000e+00> : vector<1xf32>
      %19 = vector.multi_reduction <add>, %18, %cst_9 [1, 2] : vector<1x1x64xf32> to vector<1xf32>
      %20 = vector.shape_cast %19 : vector<1xf32> to vector<1x1x1xf32>
      %21 = vector.extract %20[0, 0, 0] : f32 from vector<1x1x1xf32>
      %cst_10 = arith.constant 0.00260416674 : f32
      %22 = arith.mulf %16, %cst_10 : f32
      %cst_11 = arith.constant 0.00223214296 : f32
      %23 = arith.mulf %21, %cst_11 : f32
      %cst_12 = arith.constant 1.000000e-01 : f32
      %24 = arith.mulf %cst_12, %23 : f32
      %25 = arith.addf %22, %24 : f32
      %c0_13 = arith.constant 0 : index
      %c0_14 = arith.constant 0 : index
      %26 = memref.load %arg4[%c0_13, %c0_14] : memref<1x1xf32, #tpu.memory_space<smem>>
      memref.store %25, %arg4[%c0_13, %c0_14] : memref<1x1xf32, #tpu.memory_space<smem>>
    } else {
    }
    return
  }
  func.func @transform_0(%arg0: i32) -> (i32, i32) {
    %c0_i32 = arith.constant 0 : i32
    %0 = arith.minsi %arg0, %c0_i32 : i32
    %c0_i32_0 = arith.constant 0 : i32
    %c0_i32_1 = arith.constant 0 : i32
    return %0, %c0_i32_0 : i32, i32
  }
  func.func @transform_1(%arg0: i32) -> (i32, i32) {
    %c0_i32 = arith.constant 0 : i32
    %0 = arith.minsi %arg0, %c0_i32 : i32
    %c0_i32_0 = arith.constant 0 : i32
    %c0_i32_1 = arith.constant 0 : i32
    return %0, %c0_i32_0 : i32, i32
  }
  func.func @transform_2(%arg0: i32) -> (i32, i32) {
    %c0_i32 = arith.constant 0 : i32
    %0 = arith.minsi %arg0, %c0_i32 : i32
    %c0_i32_0 = arith.constant 0 : i32
    %c0_i32_1 = arith.constant 0 : i32
    return %0, %c0_i32_0 : i32, i32
  }
  func.func @transform_3(%arg0: i32) -> (i32, i32) {
    %c0_i32 = arith.constant 0 : i32
    %c0_i32_0 = arith.constant 0 : i32
    %c0_i32_1 = arith.constant 0 : i32
    return %c0_i32, %c0_i32_0 : i32, i32
  }
}

</mosaic_0001>

<llo_original>
// kernel: tpu_custom_call.1
$region0: #{tpu_custom_call.1}
  #allocation0 [shape = 'u32[]', space=smem, size = 0x4, offset = 0x4, fixed_abs, tag = 'smem constant byte address 0x4 - core index']
  #allocation1 [shape = 'u32[144,128]{1,0:T(1,128)}', space=vmem, size = 0x12000, scoped, tag = 'internal scratch']
  #allocation2 [shape = 'f32[1,48]{1,0:T(1,128)}', space=vmem, size = 0x200, scoped, tag = 'scratch operand']
  #allocation3 [shape = 'f32[1,64]{1,0:T(1,128)}', space=vmem, size = 0x200, scoped, tag = 'scratch operand']
  #allocation4 [shape = 'f32[1,64]{1,0:T(1,128)}', space=vmem, size = 0x200, scoped, tag = 'scratch operand']
  %s0 = inlined_call_operand.hbm [shape: f32[8,48], index: 0, kind: input, shape index: {}]
  %s1 = inlined_call_operand.hbm [shape: f32[8,48], index: 1, kind: input, shape index: {}]
  %s2 = inlined_call_operand.hbm [shape: f32[8,64], index: 2, kind: input, shape index: {}]
  %s3 = inlined_call_operand.hbm [shape: f32[1,1], index: 3, kind: output, shape index: {}]
  %s4 = sld [smem:[#allocation0]]
  $region46: #{tpu_custom_call.1} parent=0
    _
  %s6 = ssub.s32 1, %s4
  %s7 = scalar_select 0, %s6, %s4
  $region1: #{tpu_custom_call.1} parent=0
    #allocation5 [shape = 'u8[4096]{0}', space=vmem, size = 0x1000, scoped, tag = 'input window, operand 0, single buffered']
    #allocation6 [shape = 's32[1]{0}', space=sflag, size = 0x4, scoped, tag = 'scoped memory for tpu_custom_call.1']
    #allocation7 [shape = 's32[1]{0}', space=sflag, size = 0x4, scoped, tag = 'scoped memory for tpu_custom_call.1']
    #allocation8 [shape = 'u8[4096]{0}', space=vmem, size = 0x1000, scoped, tag = 'input window, operand 1, single buffered']
    #allocation9 [shape = 's32[1]{0}', space=sflag, size = 0x4, scoped, tag = 'scoped memory for tpu_custom_call.1']
    #allocation10 [shape = 'u8[4096]{0}', space=vmem, size = 0x1000, scoped, tag = 'input window, operand 2, single buffered']
    #allocation11 [shape = 'u8[512]{0}', space=smem, size = 0x200, scoped, tag = 'output window, operand 0, single buffered']
    %8 = vsyncpa [#allocation6], 0
    %9 = vsyncpa [#allocation9], 0
    %10 = vsyncpa [#allocation7], 0
    // Predicated region
    $region2: #{tpu_custom_call.1} parent=1 // pred_check
      _
    $region3: #{tpu_custom_call.1} parent=1 // pred_check_branch
      %12 = sbr.rel (0) target = $region5
    $region4: #{tpu_custom_call.1} parent=1 // pred_region
      %s14 = ssub.s32 128, 128
      %15 = vsyncadd [#allocation6], %s14
      %s17 = sshll.u32 [#allocation5], 4
      %s18 = int_to_ptr.vmem [resolvable:$true] %s17
      %20 = dma.hbm_to_vmem [thread:$0]  %s0, 128, %s18, [#allocation6]
    $region5: #{tpu_custom_call.1} parent=1 // pred_fallthru
      _
    // Predicated region
    $region6: #{tpu_custom_call.1} parent=1 // pred_check
      _
    $region7: #{tpu_custom_call.1} parent=1 // pred_check_branch
      %22 = sbr.rel (0) target = $region9
    $region8: #{tpu_custom_call.1} parent=1 // pred_region
      %s24 = ssub.s32 128, 128
      %25 = vsyncadd [#allocation9], %s24
      %s27 = sshll.u32 [#allocation8], 4
      %s28 = int_to_ptr.vmem [resolvable:$true] %s27
      %30 = dma.hbm_to_vmem [thread:$0]  %s1, 128, %s28, [#allocation9]
    $region9: #{tpu_custom_call.1} parent=1 // pred_fallthru
      _
    // Predicated region
    $region10: #{tpu_custom_call.1} parent=1 // pred_check
      _
    $region11: #{tpu_custom_call.1} parent=1 // pred_check_branch
      %32 = sbr.rel (0) target = $region13
    $region12: #{tpu_custom_call.1} parent=1 // pred_region
      %s34 = ssub.s32 128, 128
      %35 = vsyncadd [#allocation9], %s34
      %s37 = sshll.u32 [#allocation10], 4
      %s38 = int_to_ptr.vmem [resolvable:$true] %s37
      %40 = dma.hbm_to_vmem [thread:$0]  %s2, 128, %s38, [#allocation9]
    $region13: #{tpu_custom_call.1} parent=1 // pred_fallthru
      _
    // Predicated region
    $region14: #{tpu_custom_call.1} parent=1 // pred_check
      _
    $region15: #{tpu_custom_call.1} parent=1 // pred_check_branch
      %42 = sbr.rel (0) target = $region17
    $region16: #{tpu_custom_call.1} parent=1 // pred_region
      %43 = dma.done [#allocation6], 128
    $region17: #{tpu_custom_call.1} parent=1 // pred_fallthru
      _
    // Predicated region
    $region18: #{tpu_custom_call.1} parent=1 // pred_check
      _
    $region19: #{tpu_custom_call.1} parent=1 // pred_check_branch
      %45 = sbr.rel (0) target = $region21
    $region20: #{tpu_custom_call.1} parent=1 // pred_region
      %46 = dma.done [#allocation9], 128
    $region21: #{tpu_custom_call.1} parent=1 // pred_fallthru
      _
    // Predicated region
    $region22: #{tpu_custom_call.1} parent=1 // pred_check
      _
    $region23: #{tpu_custom_call.1} parent=1 // pred_check_branch
      %48 = sbr.rel (0) target = $region25
    $region24: #{tpu_custom_call.1} parent=1 // pred_region
      %49 = dma.done [#allocation9], 128
    $region25: #{tpu_custom_call.1} parent=1 // pred_fallthru
      _
    %p50 = scmp.eq.s32.totalorder 0, 0
    // Predicated region
    $region26: #{tpu_custom_call.1} parent=1 // pred_check
      %p51 = pneg %p50
    $region27: #{tpu_custom_call.1} parent=1 // pred_check_branch
      %53 = sbr.rel (%p51) target = $region29
    $region28: #{tpu_custom_call.1} parent=1 // pred_region
      %vm54 = vcmask 385024
      %55 = vst.msk [vmem:[#allocation2] sm:$0x1] %vm54, 0.0
      %vm56 = vcmask 516096
      %57 = vst.msk [vmem:[#allocation3] sm:$0x1] %vm56, 0.0
      %58 = vst.msk [vmem:[#allocation4] sm:$0x1] %vm56, 0.0
    $region29: #{tpu_custom_call.1} parent=1 // pred_fallthru
      _
    %p59 = scmp.lt.s32.totalorder 0, 1
    // Predicated region
    $region30: #{tpu_custom_call.1} parent=1 // pred_check
      %p60 = pneg %p59
    $region31: #{tpu_custom_call.1} parent=1 // pred_check_branch
      %62 = sbr.rel (%p60) target = $region33
    $region32: #{tpu_custom_call.1} parent=1 // pred_region
      %v63 = vld [vmem:[#allocation5] sm:$0xff]
      %v64 = vld [vmem:[#allocation8] sm:$0xff]
      %v65 = vsub.f32 %v63, %v64
      %v66 = vmul.f32 %v65, %v65
      %v67 = vld [vmem:[#allocation2] sm:$0x1]
      %vm68 = vcmask 392192
      %v69 = vsel %vm68, %v66, 0.0
      %v70 = vrot.slane %v69, 4
      %v71 = vadd.f32 %v69, %v70
      %v72 = vrot.slane %v71, 2
      %v73 = vadd.f32 %v71, %v72
      %v74 = vrot.slane %v73, 1
      %v75 = vadd.f32 %v73, %v74
      %v76 = vadd.f32 %v67, %v75
      %vm77 = vcmask 385024
      %78 = vst.msk [vmem:[#allocation2] sm:$0x1] %vm77, %v76
      %v79 = vld [vmem:[#allocation10] sm:$0xff]
      %v80 = vrot.slane %v79, 7
      %v81 = vlaneseq
      %v82 = vshrl.u32 %v81, 7
      %vm83 = vcmp.eq.s32.totalorder %v82, 0
      %v84 = vld [vmem:[#allocation4] sm:$0x1]
      %v86 = vlaneseq
      %v87 = vshrl.u32 %v86, 7
      %v88 = vsub.s32 0, %v87
      %v89 = vrot.slane %v84, %v88
      %v91 = vsel %vm83, %v89, %v80
      %s92 = smul.u32 0, 8
      %v93 = vstv %s92
      %v94 = vadd.s32 %v82, %v93
      %v95 = vsub.f32 %v79, %v91
      %vm96 = vcmp.ge.s32.totalorder %v94, 1
      %vm97 = vcmp.le.s32.totalorder %v94, 7
      %vm98 = vmand %vm96, %vm97
      %v99 = vld [vmem:[#allocation3] sm:$0x1]
      %v100 = vmul.f32 %v95, %v95
      %v101 = vsel %vm98, %v100, 0.0
      %vm102 = vcmask 523264
      %v103 = vsel %vm102, %v101, 0.0
      %v104 = vrot.slane %v103, 4
      %v105 = vadd.f32 %v103, %v104
      %v106 = vrot.slane %v105, 2
      %v107 = vadd.f32 %v105, %v106
      %v108 = vrot.slane %v107, 1
      %v109 = vadd.f32 %v107, %v108
      %v110 = vadd.f32 %v99, %v109
      %vm111 = vcmask 516096
      %112 = vst.msk [vmem:[#allocation3] sm:$0x1] %vm111, %v110
      %v113 = vld [vmem:[#allocation10 + $0x7] sm:$0x1]
      %114 = vst.msk [vmem:[#allocation4] sm:$0x1] %vm111, %v113
    $region33: #{tpu_custom_call.1} parent=1 // pred_fallthru
      _
    // Predicated region
    $region34: #{tpu_custom_call.1} parent=1 // pred_check
      %p115 = pneg %p50
    $region35: #{tpu_custom_call.1} parent=1 // pred_check_branch
      %117 = sbr.rel (%p115) target = $region37
    $region36: #{tpu_custom_call.1} parent=1 // pred_region
      %v118 = vld [vmem:[#allocation2] sm:$0x1]
      %vm119 = vcmask 385024
      %v120 = vsel %vm119, %v118, 0.0
      %121 = vadd.xlane.f32.xlu0 %v120
      %v122 = vpop.xlane.xlu0 %121
      %v123 = vrot.slane %v122, 4
      %v124 = vadd.f32 %v122, %v123
      %v125 = vrot.slane %v124, 2
      %v126 = vadd.f32 %v124, %v125
      %v127 = vrot.slane %v126, 1
      %v128 = vadd.f32 %v126, %v127
      %s129 = vtos %v128
      %v130 = vld [vmem:[#allocation3] sm:$0x1]
      %vm131 = vcmask 516096
      %v132 = vsel %vm131, %v130, 0.0
      %133 = vadd.xlane.f32.xlu0 %v132
      %v134 = vpop.xlane.xlu0 %133
      %v135 = vrot.slane %v134, 4
      %v136 = vadd.f32 %v134, %v135
      %v137 = vrot.slane %v136, 2
      %v138 = vadd.f32 %v136, %v137
      %v139 = vrot.slane %v138, 1
      %v140 = vadd.f32 %v138, %v139
      %s141 = vtos %v140
      %s142 = smul.f32 %s129, 0.0026041667
      %s143 = smul.f32 %s141, 0.002232143
      %s144 = smul.f32 %s143, 0.1
      %s145 = sadd.f32 %s142, %s144
      %s146 = scalar_lea.smem [#allocation11], 0
      %147 = sst [smem:[%s146]] %s145
    $region37: #{tpu_custom_call.1} parent=1 // pred_fallthru
      _
    // Predicated region
    $region38: #{tpu_custom_call.1} parent=1 // pred_check
      _
    $region39: #{tpu_custom_call.1} parent=1 // pred_check_branch
      %149 = sbr.rel (0) target = $region41
    $region40: #{tpu_custom_call.1} parent=1 // pred_region
      %s151 = ssub.s32 16, 16
      %152 = vsyncadd [#allocation7], %s151
      %155 = dma.smem_to_hbm [#allocation11], 16, %s3, [#allocation7]
    $region41: #{tpu_custom_call.1} parent=1 // pred_fallthru
      _
    // Predicated region
    $region42: #{tpu_custom_call.1} parent=1 // pred_check
      _
    $region43: #{tpu_custom_call.1} parent=1 // pred_check_branch
      %157 = sbr.rel (0) target = $region45
    $region44: #{tpu_custom_call.1} parent=1 // pred_region
      %158 = dma.done [#allocation7], 16
    $region45: #{tpu_custom_call.1} parent=1 // pred_fallthru
      _
    %159 = sfence
    %160 = vsyncpa [#allocation6], 1
    %161 = vsyncpa [#allocation9], 1
    %162 = vsyncpa [#allocation7], 1

</llo_original>
